<compile_context>
chip_gen: v5e
topology: v5e:2x2
jax: 0.10.0
libtpu: 0.0.40
codegen_flags: <defaults>
</compile_context>

<pallas_src>
import functools

import jax
import jax.numpy as jnp
from jax.experimental import pallas as pl
from jax.experimental.pallas import tpu as pltpu

LANE = 128
_VMEM = pltpu.MemorySpace.VMEM


def _round_up(x, m):
    return ((x + m - 1) // m) * m


def _round_down(x, m):
    return (x // m) * m


def _cdiv(a, b):
    return (a + b - 1) // b


def _vmem_capacity_bytes():
    """Per-core VMEM (v5e/v6e 128 MiB, v7x 64 MiB); conservative fallback."""
    try:
        return int(pltpu.get_tpu_info().vmem_capacity_bytes)
    except Exception:
        return 64 * 1024 * 1024


def _block_spec(shape, index_map, *, single_buffer=False):
    """VMEM BlockSpec; single_buffer=True requests Buffered(1) for resident operands."""
    if single_buffer:
        try:
            return pl.BlockSpec(shape, index_map, memory_space=_VMEM,
                                pipeline_mode=pl.Buffered(1))
        except TypeError:
            pass  # older jax without pipeline_mode: default (double) buffering
    return pl.BlockSpec(shape, index_map, memory_space=_VMEM)


def mlp_kernel(x_ref, w1_ref, b1_ref, w2_ref, b2_ref, o_ref, acc_ref):
    """One (batch tile, hidden chunk) step: acc += relu(x @ w1_h + b1_h) @ w2_h."""
    h_idx = pl.program_id(1)

    @pl.when(h_idx == 0)
    def _init():
        acc_ref[...] = jnp.zeros_like(acc_ref)

    x = x_ref[...].astype(w1_ref.dtype)
    h = jnp.dot(x, w1_ref[...], preferred_element_type=jnp.float32)   # MXU, f32 acc
    h = jnp.maximum(h + b1_ref[...].astype(jnp.float32), 0.0)          # bias+ReLU (VPU)
    acc_ref[...] += jnp.dot(h.astype(w2_ref.dtype), w2_ref[...],
                            preferred_element_type=jnp.float32)        # MXU, f32 acc

    @pl.when(h_idx == pl.num_programs(1) - 1)
    def _finalize():
        o_ref[...] = (acc_ref[...] + b2_ref[...].astype(jnp.float32)).astype(o_ref.dtype)


def prepare_params(w1, b1, w2, b2, dtype=None):
    """One-time parameter prep (hoisted off the forward path).

    Transposes PyTorch-layout weights to (in, out) and zero-pads hidden /
    num_classes up to multiples of 128 so every kernel operand is lane-dense.
    Padding is numerically exact: padded hidden cols give relu(0+0)=0 and hit
    zero rows of w2t; padded class cols are sliced away by the wrapper.
    Pass dtype=jnp.bfloat16 (and feed bf16 x) to halve HBM/VMEM traffic and use
    the native bf16 MXU on v6e/v7x (kernel accumulation stays f32).
    """
    if dtype is not None:
        w1, b1, w2, b2 = (t.astype(dtype) for t in (w1, b1, w2, b2))
    hidden, in_f = w1.shape
    num_classes = w2.shape[0]
    hid_p = _round_up(hidden, LANE)
    nc_p = _round_up(num_classes, LANE)
    # TODO(synk): optionally also pad in_f to a 128 multiple here and have the data
    # pipeline supply lane-aligned x (avoids a per-call pad; modest MXU-K win, v5e most).
    w1t = jnp.zeros((in_f, hid_p), w1.dtype).at[:, :hidden].set(w1.T)
    b1r = jnp.zeros((1, hid_p), b1.dtype).at[0, :hidden].set(b1)
    w2t = jnp.zeros((hid_p, nc_p), w2.dtype).at[:hidden, :num_classes].set(w2.T)
    b2r = jnp.zeros((1, nc_p), b2.dtype).at[0, :num_classes].set(b2)
    return w1t, b1r, w2t, b2r


@functools.partial(jax.jit, static_argnames=("num_classes", "max_hidden_tile"))
def neural_net_forward(x, w1t, b1r, w2t, b2r, *, num_classes, max_hidden_tile=None):
    """Equivalent of NeuralNet.forward.  x: (B, input_size) -> (B, num_classes)."""
    B, in_f = x.shape
    hid_p = w1t.shape[1]
    nc_p = w2t.shape[1]
    assert hid_p % LANE == 0 and nc_p % LANE == 0, "run prepare_params() first"

    w_item = jnp.dtype(w1t.dtype).itemsize
    x_item = jnp.dtype(x.dtype).itemsize
    sub = 8 if x_item >= 4 else 16            # f32 sublane 8, bf16 16

    # --- VMEM budget (generation-aware, with headroom for compiler scratch). ---
    vmem_cap = _vmem_capacity_bytes()
    budget = max(vmem_cap - (12 << 20), 8 << 20)
    weight_budget = budget // 2

    # --- Hidden tiling: whole hidden resident if it fits, else stream chunks. ---
    full_w_bytes = (in_f * hid_p + hid_p + hid_p * nc_p + nc_p) * w_item
    cap_th = hid_p if max_hidden_tile is None else max(_round_up(max_hidden_tile, LANE), LANE)
    th, nh = hid_p, 1
    if full_w_bytes > weight_budget or cap_th < hid_p:
        m = hid_p // LANE
        th = LANE
        for cand_nh in range(1, m + 1):
            if m % cand_nh:
                continue
            cand_th = (m // cand_nh) * LANE
            if cand_th > cap_th:
                continue
            chunk = 2 * (in_f * cand_th + cand_th + cand_th * nc_p) * w_item
            if chunk <= weight_budget:
                th = cand_th
                break
        nh = hid_p // th

    if nh == 1:
        w_bytes = full_w_bytes                                         # resident, 1 buffer
    else:
        w_bytes = 2 * (in_f * th + th + th * nc_p) * w_item + nc_p * w_item  # streamed, 2 bufs

    # --- Batch tile: largest sublane-aligned tile fitting the remaining VMEM. ---
    per_row = 2 * in_f * x_item + 2 * nc_p * x_item + nc_p * 4 + th * 4
    rem = max(budget - w_bytes, 1 << 20)
    tb = min(_round_up(B, sub), 1024, max(_round_down(rem // per_row, sub), sub))
    tb = max(tb, sub)
    nbt = _cdiv(B, tb)
    # v7x megacore: keep >=4 batch tiles (>=2 per TensorCore) once B is large.
    if nbt < 4 and B >= 4 * 256:
        tb = max(256, _round_up(_cdiv(B, 4), sub))
        nbt = _cdiv(B, tb)
    grid = (nbt, nh)

    # --- Scoped-VMEM limit: raise above the default when the working set needs it. ---
    est = (w_bytes + 2 * tb * in_f * x_item + 2 * tb * nc_p * x_item
           + tb * nc_p * 4 + tb * th * 4)
    vmem_limit = None
    if est > 14 * 1024 * 1024:                                         # v5e default is 16 MiB
        vmem_limit = int(min(max(int(est * 1.5), 16 << 20), budget))

    cost = pl.CostEstimate(
        flops=2 * B * (in_f * hid_p + hid_p * nc_p),
        transcendentals=0,
        bytes_accessed=(B * in_f * x_item + B * nc_p * x_item
                        + full_w_bytes * (1 if nh == 1 else nbt)),
    )

    resident = nh == 1
    in_specs = [
        _block_spec((tb, in_f), lambda i, h: (i, 0)),                          # x
        _block_spec((in_f, th), lambda i, h: (0, h), single_buffer=resident),  # w1t
        _block_spec((1, th),    lambda i, h: (0, h), single_buffer=resident),  # b1
        _block_spec((th, nc_p), lambda i, h: (h, 0), single_buffer=resident),  # w2t
        _block_spec((1, nc_p),  lambda i, h: (0, 0), single_buffer=True),      # b2
    ]
    out_spec = _block_spec((tb, nc_p), lambda i, h: (i, 0))

    out_p = pl.pallas_call(
        mlp_kernel,
        out_shape=jax.ShapeDtypeStruct((B, nc_p), x.dtype),
        grid=grid,
        in_specs=in_specs,
        out_specs=out_spec,
        scratch_shapes=[pltpu.VMEM((tb, nc_p), jnp.float32)],
        compiler_params=pltpu.CompilerParams(
            dimension_semantics=("parallel", "arbitrary"),  # batch parallel, hidden reduce
            vmem_limit_bytes=vmem_limit,
        ),
        cost_estimate=cost,
    )(x, w1t, b1r, w2t, b2r)

    # TODO(synk): downstream consumers could take the lane-padded (B, nc_p) output
    # directly and fuse away this slice (it costs one extra HBM pass).
    return out_p[:, :num_classes]


if __name__ == "__main__":
    key = jax.random.PRNGKey(0)

    def make_params(k, in_f, hid, ncls):
        k1, k2, k3, k4 = jax.random.split(k, 4)
        lim1 = 1.0 / (in_f ** 0.5)
        lim2 = 1.0 / (hid ** 0.5)
        w1 = jax.random.uniform(k1, (hid, in_f), jnp.float32, -lim1, lim1)
        b1 = jax.random.uniform(k2, (hid,), jnp.float32, -lim1, lim1)
        w2 = jax.random.uniform(k3, (ncls, hid), jnp.float32, -lim2, lim2)
        b2 = jax.random.uniform(k4, (ncls,), jnp.float32, -lim2, lim2)
        return w1, b1, w2, b2

    def torch_ref(xx, w1, b1, w2, b2):
        return jnp.maximum(xx @ w1.T + b1, 0.0) @ w2.T + b2

    kx, kp1, kp2 = jax.random.split(key, 3)

    # Config 1: small shapes, whole hidden dim VMEM-resident (nh == 1).
    batch, input_size, hidden_size, num_classes = 8, 64, 32, 16
    x = jax.random.normal(kx, (batch, input_size), dtype=jnp.float32)
    params = make_params(kp1, input_size, hidden_size, num_classes)
    prep = prepare_params(*params)
    out = jax.block_until_ready(neural_net_forward(x, *prep, num_classes=num_classes))
    ref = torch_ref(x, *params)
    assert out.shape == (batch, num_classes)
    assert jnp.allclose(out, ref, atol=1e-4, rtol=1e-4)

    # Config 2: exercises the hidden-dim reduction axis (nh == 2) and a partial
    # batch edge block (batch not a sublane multiple).
    batch2, hidden_size2 = 10, 256
    x2 = jax.random.normal(kx, (batch2, input_size), dtype=jnp.float32)
    params2 = make_params(kp2, input_size, hidden_size2, num_classes)
    prep2 = prepare_params(*params2)
    out2 = jax.block_until_ready(
        neural_net_forward(x2, *prep2, num_classes=num_classes, max_hidden_tile=128))
    ref2 = torch_ref(x2, *params2)
    assert out2.shape == (batch2, num_classes)
    assert jnp.allclose(out2, ref2, atol=1e-4, rtol=1e-4)

    print("KERNEL_OK")
</pallas_src>

<mosaic_0001>
module attributes {stable_mosaic.version = 11 : i64} {
  func.func @mlp_kernel(%arg0: i32, %arg1: i32, %arg2: memref<8x64xf32, #tpu.memory_space<vmem>>, %arg3: memref<64x128xf32, #tpu.memory_space<vmem>>, %arg4: memref<1x128xf32, #tpu.memory_space<vmem>>, %arg5: memref<128x128xf32, #tpu.memory_space<vmem>>, %arg6: memref<1x128xf32, #tpu.memory_space<vmem>>, %arg7: memref<8x128xf32, #tpu.memory_space<vmem>>, %arg8: memref<8x128xf32, #tpu.memory_space<vmem>>) attributes {dimension_semantics = [#tpu.dimension_semantics<parallel>, #tpu.dimension_semantics<arbitrary>], iteration_bounds = array<i64: 1, 1>, scalar_prefetch = 0 : i64, scratch_operands = 1 : i64, tpu.core_type = #tpu.core_type<tc>, window_params = [{transform_indices = @transform_0, window_bounds = array<i64: 8, 64>}, {pipeline_mode = #tpu.pipeline_mode<synchronous>, transform_indices = @transform_1, window_bounds = array<i64: 64, 128>}, {pipeline_mode = #tpu.pipeline_mode<synchronous>, transform_indices = @transform_2, window_bounds = array<i64: 1, 128>}, {pipeline_mode = #tpu.pipeline_mode<synchronous>, transform_indices = @transform_3, window_bounds = array<i64: 128, 128>}, {pipeline_mode = #tpu.pipeline_mode<synchronous>, transform_indices = @transform_4, window_bounds = array<i64: 1, 128>}, {transform_indices = @transform_5, window_bounds = array<i64: 8, 128>}]} {
    %c0_i32 = arith.constant 0 : i32
    %0 = arith.cmpi eq, %arg1, %c0_i32 : i32
    %1 = arith.extui %0 : i1 to i32
    %c0_i32_0 = arith.constant 0 : i32
    %2 = arith.cmpi ne, %1, %c0_i32_0 : i32
    scf.if %2 {
      %cst_16 = arith.constant 0.000000e+00 : f32
      %19 = vector.broadcast %cst_16 : f32 to vector<8x128xf32>
      %c0_17 = arith.constant 0 : index
      %c0_18 = arith.constant 0 : index
      %20 = vector.load %arg8[%c0_17, %c0_18] : memref<8x128xf32, #tpu.memory_space<vmem>>, vector<8x128xf32>
      tpu.vector_store %arg8[%c0_17, %c0_18], %19 {strides = array<i32>} : memref<8x128xf32, #tpu.memory_space<vmem>>, vector<8x128xf32>,
    } else {
    }
    %c0 = arith.constant 0 : index
    %c0_1 = arith.constant 0 : index
    %3 = vector.load %arg2[%c0, %c0_1] : memref<8x64xf32, #tpu.memory_space<vmem>>, vector<8x64xf32>
    %c0_2 = arith.constant 0 : index
    %c0_3 = arith.constant 0 : index
    %4 = vector.load %arg3[%c0_2, %c0_3] : memref<64x128xf32, #tpu.memory_space<vmem>>, vector<64x128xf32>
    %cst = arith.constant dense<0.000000e+00> : vector<8x128xf32>
    %5 = tpu.matmul %3, %4, %cst {dimension_numbers = #tpu.dot_dimension_numbers<[1], [0], [0], [1], [0, 0, 1, 1], [], []>} : vector<8x64xf32>, vector<64x128xf32>, vector<8x128xf32> -> vector<8x128xf32>
    %c0_4 = arith.constant 0 : index
    %c0_5 = arith.constant 0 : index
    %6 = vector.load %arg4[%c0_4, %c0_5] : memref<1x128xf32, #tpu.memory_space<vmem>>, vector<1x128xf32>
    %7 = vector.broadcast %6 : vector<1x128xf32> to vector<8x128xf32>
    %8 = arith.addf %5, %7 : vector<8x128xf32>
    %cst_6 = arith.constant 0.000000e+00 : f32
    %9 = vector.broadcast %cst_6 : f32 to vector<8x128xf32>
    %10 = arith.maximumf %8, %9 : vector<8x128xf32>
    %c0_7 = arith.constant 0 : index
    %c0_8 = arith.constant 0 : index
    %11 = vector.load %arg8[%c0_7, %c0_8] : memref<8x128xf32, #tpu.memory_space<vmem>>, vector<8x128xf32>
    %c0_9 = arith.constant 0 : index
    %c0_10 = arith.constant 0 : index
    %12 = vector.load %arg5[%c0_9, %c0_10] : memref<128x128xf32, #tpu.memory_space<vmem>>, vector<128x128xf32>
    %cst_11 = arith.constant dense<0.000000e+00> : vector<8x128xf32>
    %13 = tpu.matmul %10, %12, %cst_11 {dimension_numbers = #tpu.dot_dimension_numbers<[1], [0], [0], [1], [0, 0, 1, 1], [], []>} : vector<8x128xf32>, vector<128x128xf32>, vector<8x128xf32> -> vector<8x128xf32>
    %14 = arith.addf %11, %13 : vector<8x128xf32>
    %c0_12 = arith.constant 0 : index
    %c0_13 = arith.constant 0 : index
    %15 = vector.load %arg8[%c0_12, %c0_13] : memref<8x128xf32, #tpu.memory_space<vmem>>, vector<8x128xf32>
    tpu.vector_store %arg8[%c0_12, %c0_13], %14 {strides = array<i32>} : memref<8x128xf32, #tpu.memory_space<vmem>>, vector<8x128xf32>,
    %c0_i32_14 = arith.constant 0 : i32
    %16 = arith.cmpi eq, %arg1, %c0_i32_14 : i32
    %17 = arith.extui %16 : i1 to i32
    %c0_i32_15 = arith.constant 0 : i32
    %18 = arith.cmpi ne, %17, %c0_i32_15 : i32
    scf.if %18 {
      %c0_16 = arith.constant 0 : index
      %c0_17 = arith.constant 0 : index
      %19 = vector.load %arg8[%c0_16, %c0_17] : memref<8x128xf32, #tpu.memory_space<vmem>>, vector<8x128xf32>
      %c0_18 = arith.constant 0 : index
      %c0_19 = arith.constant 0 : index
      %20 = vector.load %arg6[%c0_18, %c0_19] : memref<1x128xf32, #tpu.memory_space<vmem>>, vector<1x128xf32>
      %21 = vector.broadcast %20 : vector<1x128xf32> to vector<8x128xf32>
      %22 = arith.addf %19, %21 : vector<8x128xf32>
      %c0_20 = arith.constant 0 : index
      %c0_21 = arith.constant 0 : index
      %23 = vector.load %arg7[%c0_20, %c0_21] : memref<8x128xf32, #tpu.memory_space<vmem>>, vector<8x128xf32>
      tpu.vector_store %arg7[%c0_20, %c0_21], %22 {strides = array<i32>} : memref<8x128xf32, #tpu.memory_space<vmem>>, vector<8x128xf32>,
    } else {
    }
    return
  }
  func.func @transform_0(%arg0: i32, %arg1: i32) -> (i32, i32) {
    %c0_i32 = arith.constant 0 : i32
    %c0_i32_0 = arith.constant 0 : i32
    return %arg0, %c0_i32 : i32, i32
  }
  func.func @transform_1(%arg0: i32, %arg1: i32) -> (i32, i32) {
    %c0_i32 = arith.constant 0 : i32
    %c0_i32_0 = arith.constant 0 : i32
    return %c0_i32, %arg1 : i32, i32
  }
  func.func @transform_2(%arg0: i32, %arg1: i32) -> (i32, i32) {
    %c0_i32 = arith.constant 0 : i32
    %c0_i32_0 = arith.constant 0 : i32
    return %c0_i32, %arg1 : i32, i32
  }
  func.func @transform_3(%arg0: i32, %arg1: i32) -> (i32, i32) {
    %c0_i32 = arith.constant 0 : i32
    %c0_i32_0 = arith.constant 0 : i32
    return %arg1, %c0_i32 : i32, i32
  }
  func.func @transform_4(%arg0: i32, %arg1: i32) -> (i32, i32) {
    %c0_i32 = arith.constant 0 : i32
    %c0_i32_0 = arith.constant 0 : i32
    %c0_i32_1 = arith.constant 0 : i32
    return %c0_i32, %c0_i32_0 : i32, i32
  }
  func.func @transform_5(%arg0: i32, %arg1: i32) -> (i32, i32) {
    %c0_i32 = arith.constant 0 : i32
    %c0_i32_0 = arith.constant 0 : i32
    return %arg0, %c0_i32 : i32, i32
  }
}

</mosaic_0001>

<llo_original>
// kernel: neural_net_forward.1
$region0: #{neural_net_forward.1}
  #allocation0 [shape = 'u32[]', space=smem, size = 0x4, offset = 0x4, fixed_abs, tag = 'smem constant byte address 0x4 - core index']
  #allocation1 [shape = 'u32[72,128]{1,0:T(1,128)}', space=vmem, size = 0x9000, scoped, tag = 'internal scratch']
  #allocation2 [shape = 'f32[8,128]{1,0:T(8,128)}', space=vmem, size = 0x1000, scoped, tag = 'scratch operand']
  %s0 = inlined_call_operand.hbm [shape: f32[8,64], index: 0, kind: input, shape index: {}]
  %s1 = inlined_call_operand.hbm [shape: f32[64,128], index: 1, kind: input, shape index: {}]
  %s2 = inlined_call_operand.vmem [shape: f32[1,128], index: 2, kind: input, shape index: {}]
  %s3 = inlined_call_operand.hbm [shape: f32[128,128], index: 3, kind: input, shape index: {}]
  %s4 = inlined_call_operand.vmem [shape: f32[1,128], index: 4, kind: input, shape index: {}]
  %s5 = inlined_call_operand.hbm [shape: f32[8,128], index: 5, kind: output, shape index: {}]
  %s6 = sld [smem:[#allocation0]]
  $region50: #{neural_net_forward.1} parent=0
    _
  %s8 = ssub.s32 1, %s6
  %s9 = scalar_select 0, %s8, %s6
  $region1: #{neural_net_forward.1} parent=0
    #allocation3 [shape = 'u8[4096]{0}', space=vmem, size = 0x1000, scoped, tag = 'input window, operand 0, single buffered']
    #allocation4 [shape = 's32[1]{0}', space=sflag, size = 0x4, scoped, tag = 'scoped memory for neural_net_forward.1']
    #allocation5 [shape = 's32[1]{0}', space=sflag, size = 0x4, scoped, tag = 'scoped memory for neural_net_forward.1']
    #allocation6 [shape = 'u8[32768]{0}', space=vmem, size = 0x8000, scoped, tag = 'input window, operand 1, single buffered']
    #allocation7 [shape = 's32[1]{0}', space=sflag, size = 0x4, scoped, tag = 'scoped memory for neural_net_forward.1']
    #allocation8 [shape = 'u8[65536]{0}', space=vmem, size = 0x10000, scoped, tag = 'input window, operand 3, single buffered']
    #allocation9 [shape = 'u8[4096]{0}', space=vmem, size = 0x1000, scoped, tag = 'output window, operand 0, single buffered']
    %10 = vsyncpa [#allocation4], 0
    %11 = vsyncpa [#allocation7], 0
    %12 = vsyncpa [#allocation5], 0
    // Predicated region
    $region2: #{neural_net_forward.1} parent=1 // pred_check
      _
    $region3: #{neural_net_forward.1} parent=1 // pred_check_branch
      %14 = sbr.rel (0) target = $region5
    $region4: #{neural_net_forward.1} parent=1 // pred_region
      %16 = vsyncadd [#allocation4], 0
      %s18 = sshll.u32 %s0, 4
      %s19 = int_to_ptr.hbm [resolvable:$true] %s18
      %s20 = sshll.u32 [#allocation3], 4
      %s21 = int_to_ptr.vmem [resolvable:$true] %s20
      %23 = dma.hbm_to_vmem [thread:$0]  %s19, 128, %s21, [#allocation4]
    $region5: #{neural_net_forward.1} parent=1 // pred_fallthru
      _
    // Predicated region
    $region6: #{neural_net_forward.1} parent=1 // pred_check
      _
    $region7: #{neural_net_forward.1} parent=1 // pred_check_branch
      %25 = sbr.rel (0) target = $region9
    $region8: #{neural_net_forward.1} parent=1 // pred_region
      %27 = vsyncadd [#allocation7], 0
      %s28 = sshll.u32 %s1, 4
      %s29 = int_to_ptr.hbm [resolvable:$true] %s28
      %s30 = sshll.u32 [#allocation6], 4
      %s31 = int_to_ptr.vmem [resolvable:$true] %s30
      %36 = dma.hbm_to_vmem [thread:$0]  %s29, 1024, %s31, [#allocation7], 128, 128, 8
    $region9: #{neural_net_forward.1} parent=1 // pred_fallthru
      _
    // Predicated region
    $region10: #{neural_net_forward.1} parent=1 // pred_check
      _
    $region11: #{neural_net_forward.1} parent=1 // pred_check_branch
      %38 = sbr.rel (0) target = $region13
    $region12: #{neural_net_forward.1} parent=1 // pred_region
      _
    $region13: #{neural_net_forward.1} parent=1 // pred_fallthru
      _
    // Predicated region
    $region14: #{neural_net_forward.1} parent=1 // pred_check
      _
    $region15: #{neural_net_forward.1} parent=1 // pred_check_branch
      %40 = sbr.rel (0) target = $region17
    $region16: #{neural_net_forward.1} parent=1 // pred_region
      %42 = vsyncadd [#allocation7], 0
      %s43 = sshll.u32 %s3, 4
      %s44 = int_to_ptr.hbm [resolvable:$true] %s43
      %s45 = sshll.u32 [#allocation8], 4
      %s46 = int_to_ptr.vmem [resolvable:$true] %s45
      %51 = dma.hbm_to_vmem [thread:$0]  %s44, 2048, %s46, [#allocation7], 128, 128, 8
    $region17: #{neural_net_forward.1} parent=1 // pred_fallthru
      _
    // Predicated region
    $region18: #{neural_net_forward.1} parent=1 // pred_check
      _
    $region19: #{neural_net_forward.1} parent=1 // pred_check_branch
      %53 = sbr.rel (0) target = $region21
    $region20: #{neural_net_forward.1} parent=1 // pred_region
      _
    $region21: #{neural_net_forward.1} parent=1 // pred_fallthru
      _
    // Predicated region
    $region22: #{neural_net_forward.1} parent=1 // pred_check
      _
    $region23: #{neural_net_forward.1} parent=1 // pred_check_branch
      %55 = sbr.rel (0) target = $region25
    $region24: #{neural_net_forward.1} parent=1 // pred_region
      %57 = dma.done [#allocation4], 128
    $region25: #{neural_net_forward.1} parent=1 // pred_fallthru
      _
    // Predicated region
    $region26: #{neural_net_forward.1} parent=1 // pred_check
      _
    $region27: #{neural_net_forward.1} parent=1 // pred_check_branch
      %59 = sbr.rel (0) target = $region29
    $region28: #{neural_net_forward.1} parent=1 // pred_region
      %61 = dma.done [#allocation7], 1024
    $region29: #{neural_net_forward.1} parent=1 // pred_fallthru
      _
    // Predicated region
    $region30: #{neural_net_forward.1} parent=1 // pred_check
      _
    $region31: #{neural_net_forward.1} parent=1 // pred_check_branch
      %63 = sbr.rel (0) target = $region33
    $region32: #{neural_net_forward.1} parent=1 // pred_region
      %65 = dma.done [#allocation7], 2048
    $region33: #{neural_net_forward.1} parent=1 // pred_fallthru
      _
    %p66 = scmp.eq.s32.totalorder 0, 0
    // Predicated region
    $region34: #{neural_net_forward.1} parent=1 // pred_check
      %p67 = pneg %p66
    $region35: #{neural_net_forward.1} parent=1 // pred_check_branch
      %69 = sbr.rel (%p67) target = $region37
    $region36: #{neural_net_forward.1} parent=1 // pred_region
      %70 = vst [vmem:[#allocation2] sm:$0xff] 0.0
    $region37: #{neural_net_forward.1} parent=1 // pred_fallthru
      _
    %v71 = vld [vmem:[#allocation3] sm:$0xff]
    %v72 = vld [vmem:[#allocation6] sm:$0xff]
    %v73 = vld [vmem:[#allocation6 + $0x8] sm:$0xff]
    %v74 = vld [vmem:[#allocation6 + $0x10] sm:$0xff]
    %v75 = vld [vmem:[#allocation6 + $0x18] sm:$0xff]
    %v76 = vld [vmem:[#allocation6 + $0x20] sm:$0xff]
    %v77 = vld [vmem:[#allocation6 + $0x28] sm:$0xff]
    %v78 = vld [vmem:[#allocation6 + $0x30] sm:$0xff]
    %v79 = vld [vmem:[#allocation6 + $0x38] sm:$0xff]
    %v80 = vld [vmem:[%s2] sm:$0x1]
    %v82 = vperm.slane %v80, 0
    %vm84 = vcmask 523264
    %v86 = vsel %vm84, %v71, 0
    %88 = vmatpush.msra.mxu0 0.0
    %89 = vmatpush.msra.mxu0 0.0
    %90 = vmatpush.msra.mxu0 0.0
    %91 = vmatpush.msra.mxu0 0.0
    %92 = vmatpush.msra.mxu0 0.0
    %93 = vmatpush.msra.mxu0 0.0
    %94 = vmatpush.msra.mxu0 0.0
    %95 = vmatpush.msra.mxu0 0.0
    %96 = vmatpush.msra.mxu0 %v79
    %97 = vmatpush.msra.mxu0 %v78
    %98 = vmatpush.msra.mxu0 %v77
    %99 = vmatpush.msra.mxu0 %v76
    %100 = vmatpush.msra.mxu0 %v75
    %101 = vmatpush.msra.mxu0 %v74
    %102 = vmatpush.msra.mxu0 %v73
    %103 = vmatpush.msra.mxu0 %v72
    %104 = vmatmul.f32.gmra.mxu0 %v86
    %v105 = vpop.f32.mrf.mxu0
    %v106 = vadd.f32 %v82, %v105
    %107 = vdwg.mxu0
    %v108 = vmax.f32 %v106, 0.0
    %v109 = vld [vmem:[#allocation2] sm:$0xff]
    %v110 = vld [vmem:[#allocation8] sm:$0xff]
    %v111 = vld [vmem:[#allocation8 + $0x8] sm:$0xff]
    %v112 = vld [vmem:[#allocation8 + $0x10] sm:$0xff]
    %v113 = vld [vmem:[#allocation8 + $0x18] sm:$0xff]
    %v114 = vld [vmem:[#allocation8 + $0x20] sm:$0xff]
    %v115 = vld [vmem:[#allocation8 + $0x28] sm:$0xff]
    %v116 = vld [vmem:[#allocation8 + $0x30] sm:$0xff]
    %v117 = vld [vmem:[#allocation8 + $0x38] sm:$0xff]
    %v118 = vld [vmem:[#allocation8 + $0x40] sm:$0xff]
    %v119 = vld [vmem:[#allocation8 + $0x48] sm:$0xff]
    %v120 = vld [vmem:[#allocation8 + $0x50] sm:$0xff]
    %v121 = vld [vmem:[#allocation8 + $0x58] sm:$0xff]
    %v122 = vld [vmem:[#allocation8 + $0x60] sm:$0xff]
    %v123 = vld [vmem:[#allocation8 + $0x68] sm:$0xff]
    %v124 = vld [vmem:[#allocation8 + $0x70] sm:$0xff]
    %v125 = vld [vmem:[#allocation8 + $0x78] sm:$0xff]
    %126 = vmatpush.msra.mxu0 %v125
    %127 = vmatpush.msra.mxu0 %v124
    %128 = vmatpush.msra.mxu0 %v123
    %129 = vmatpush.msra.mxu0 %v122
    %130 = vmatpush.msra.mxu0 %v121
    %131 = vmatpush.msra.mxu0 %v120
    %132 = vmatpush.msra.mxu0 %v119
    %133 = vmatpush.msra.mxu0 %v118
    %134 = vmatpush.msra.mxu0 %v117
    %135 = vmatpush.msra.mxu0 %v116
    %136 = vmatpush.msra.mxu0 %v115
    %137 = vmatpush.msra.mxu0 %v114
    %138 = vmatpush.msra.mxu0 %v113
    %139 = vmatpush.msra.mxu0 %v112
    %140 = vmatpush.msra.mxu0 %v111
    %141 = vmatpush.msra.mxu0 %v110
    %142 = vmatmul.f32.gmra.mxu0 %v108
    %v143 = vpop.f32.mrf.mxu0
    %v144 = vadd.f32 0.0, %v143
    %145 = vdwg.mxu0
    %v146 = vadd.f32 %v109, %v144
    %147 = vst [vmem:[#allocation2] sm:$0xff] %v146
    // Predicated region
    $region38: #{neural_net_forward.1} parent=1 // pred_check
      %p148 = pneg %p66
    $region39: #{neural_net_forward.1} parent=1 // pred_check_branch
      %150 = sbr.rel (%p148) target = $region41
    $region40: #{neural_net_forward.1} parent=1 // pred_region
      %v151 = vld [vmem:[#allocation2] sm:$0xff]
      %v152 = vld [vmem:[%s4] sm:$0x1]
      %v154 = vperm.slane %v152, 0
      %v156 = vadd.f32 %v151, %v154
      %157 = vst [vmem:[#allocation9] sm:$0xff] %v156
    $region41: #{neural_net_forward.1} parent=1 // pred_fallthru
      _
    // Predicated region
    $region42: #{neural_net_forward.1} parent=1 // pred_check
      _
    $region43: #{neural_net_forward.1} parent=1 // pred_check_branch
      %159 = sbr.rel (0) target = $region45
    $region44: #{neural_net_forward.1} parent=1 // pred_region
      %161 = vsyncadd [#allocation5], 0
      %s163 = sshll.u32 [#allocation9], 4
      %s164 = int_to_ptr.vmem [resolvable:$true] %s163
      %s165 = sshll.u32 %s5, 4
      %s166 = int_to_ptr.hbm [resolvable:$true] %s165
      %168 = dma.vmem_to_hbm [thread:$0]  %s164, 128, %s166, [#allocation5]
    $region45: #{neural_net_forward.1} parent=1 // pred_fallthru
      _
    // Predicated region
    $region46: #{neural_net_forward.1} parent=1 // pred_check
      _
    $region47: #{neural_net_forward.1} parent=1 // pred_check_branch
      %170 = sbr.rel (0) target = $region49
    $region48: #{neural_net_forward.1} parent=1 // pred_region
      %172 = dma.done [#allocation5], 128
    $region49: #{neural_net_forward.1} parent=1 // pred_fallthru
      _
    %173 = vsyncpa [#allocation4], 1
    %174 = vsyncpa [#allocation7], 1
    %175 = vsyncpa [#allocation5], 1

</llo_original>
